<compile_context>
chip_gen: v7x
topology: tpu7x:2x2x1
jax: 0.10.0
libtpu: 0.0.40
codegen_flags: <defaults>
</compile_context>

<pallas_src>
import jax
import jax.numpy as jnp
from jax.experimental import pallas as pl
from jax.experimental.pallas import tpu as pltpu


def _round_up(v, m):
    return ((v + m - 1) // m) * m


def _cdiv(a, b):
    return (a + b - 1) // b


def _largest_aligned_divisor(dim, limit, align):
    """Largest multiple of `align` that divides `dim` and is <= limit (or None)."""
    top = (min(limit, dim) // align) * align
    for cand in range(top, 0, -align):
        if dim % cand == 0:
            return cand
    return None


def _balanced_tile(dim, target, align):
    """Tile (multiple of `align`) minimizing edge padding for ~dim/target splits."""
    nsplits = _cdiv(dim, target)
    return _round_up(_cdiv(dim, nsplits), align)


def _pick_weight_tile(dim, target, align=128):
    """Prefer an exact divisor (no padding at all); otherwise balanced padding."""
    if dim % align == 0:
        t = _largest_aligned_divisor(dim, target, align)
        if t is not None:
            return t, dim
    t = _balanced_tile(dim, target, align)
    return t, _round_up(dim, t)


def _make_kernel(has_bias: bool, use_scratch: bool, cast_dtype):
    """Kernel body specialized on (bias present, need f32 scratch, lhs cast)."""

    def body(x_ref, w_ref, b_ref, o_ref, acc_ref):
        k = pl.program_id(2)
        # CORRECTNESS NOTE: accumulating directly into o_ref (use_scratch=False)
        # is valid only because (a) the output index_map ignores k, (b) k is the
        # LAST grid axis, and (c) that axis is marked "arbitrary" so the output
        # block stays resident across the reduction.  Do not reorder the grid.
        acc = acc_ref if use_scratch else o_ref

        @pl.when(k == 0)
        def _():
            acc[...] = jnp.zeros_like(acc)

        lhs = x_ref[...]
        if cast_dtype is not None:
            lhs = lhs.astype(cast_dtype)           # VPU cast; MXU runs in bf16
        # x tile [tm, tk] @ W^T tile [tk, tn] -> canonical MXU feed, f32 accum.
        acc[...] += jnp.dot(lhs, w_ref[...], preferred_element_type=jnp.float32)

        if has_bias or use_scratch:
            @pl.when(k == pl.num_programs(2) - 1)
            def _():
                res = acc[...]
                if has_bias:
                    res = res + b_ref[...]
                o_ref[...] = res.astype(o_ref.dtype)

    if has_bias and use_scratch:
        def kernel(x_ref, w_ref, b_ref, o_ref, acc_ref):
            body(x_ref, w_ref, b_ref, o_ref, acc_ref)
    elif has_bias:
        def kernel(x_ref, w_ref, b_ref, o_ref):
            body(x_ref, w_ref, b_ref, o_ref, None)
    elif use_scratch:
        def kernel(x_ref, w_ref, o_ref, acc_ref):
            body(x_ref, w_ref, None, o_ref, acc_ref)
    else:
        def kernel(x_ref, w_ref, o_ref):
            body(x_ref, w_ref, None, o_ref, None)
    return kernel


class SplitProjectionTPU:
    """Pallas-TPU equivalent of optimum.graphcore SplitProjection (== nn.Linear).

    Parameter prep (one-time weight transpose/pad/cast, bias pad) happens in
    __init__ and is cached; __call__ only streams x through the kernel.
    """

    def __init__(self, weight, bias=None, serialization_factor=1, *,
                 compute_dtype=None,
                 tm_target=512, tn_target=512, tk_target=None,
                 ensure_two_parallel_blocks=True):
        out_features, in_features = weight.shape
        if in_features % serialization_factor != 0:
            raise ValueError(
                f"in_features={in_features} must be divisible by "
                f"serialization_factor={serialization_factor}")
        self.in_features = in_features
        self.out_features = out_features
        self.serialization_factor = serialization_factor  # API/contract parity only
        self.compute_dtype = None if compute_dtype is None else jnp.dtype(compute_dtype)
        self.ensure_two_parallel_blocks = ensure_two_parallel_blocks
        self.tm_target = tm_target

        if tk_target is None:
            tk_target = 2048 if self.compute_dtype == jnp.dtype(jnp.bfloat16) else 1024

        # ---- one-time tiling choice along K and N (exact divisors -> no padding)
        self.tk, self.k_p = _pick_weight_tile(in_features, tk_target, 128)
        self.tn_max, self.n_p = _pick_weight_tile(out_features, tn_target, 128)

        # ---- one-time weight prep: [N, K] -> [K, N], pad once (only if unaligned),
        #      cast once to compute dtype (e.g. bf16 halves weight HBM traffic).
        wt = jnp.transpose(weight)                       # [K, N]
        if (self.k_p, self.n_p) != (in_features, out_features):
            wt = jnp.pad(wt, ((0, self.k_p - in_features),
                              (0, self.n_p - out_features)))
        if self.compute_dtype is not None:
            wt = wt.astype(self.compute_dtype)
        self.wt = jax.block_until_ready(wt)

        self.bias = None
        if bias is not None:
            b = bias.astype(jnp.float32).reshape(1, out_features)
            if self.n_p != out_features:
                b = jnp.pad(b, ((0, 0), (0, self.n_p - out_features)))
            self.bias = jax.block_until_ready(b)

    def __call__(self, x):
        assert x.shape[-1] == self.in_features
        lead_shape = x.shape[:-1]
        m = 1
        for d in lead_shape:
            m *= d
        x2d = x.reshape(m, self.in_features)
        out_dtype = x.dtype

        # ---- per-call M tile: balanced edge padding, 8- (f32) / 16- (bf16) aligned.
        m_align = 16 if self.compute_dtype == jnp.dtype(jnp.bfloat16) else 8
        tm = min(self.tm_target, _balanced_tile(m, self.tm_target, m_align))
        m_p = _round_up(m, tm)

        # ---- v7x megacore: if the M axis has a single block, split N so the
        #      "parallel" grid has >= 2 programs and both TensorCores get work.
        tn = self.tn_max
        if (self.ensure_two_parallel_blocks
                and m_p // tm == 1 and self.n_p // tn == 1):
            cand = _largest_aligned_divisor(self.n_p, self.n_p // 2, 128)
            if cand is not None:
                tn = cand

        tk, k_p, n_p = self.tk, self.k_p, self.n_p

        # ---- per-call x padding only when needed.  K padding MUST be explicit
        #      zeros (reduction axis: OOB edge-block garbage would corrupt sums);
        #      M padding merely wastes a few rows of compute.
        if (m_p, k_p) != (m, self.in_features):
            x2d = jnp.pad(x2d, ((0, m_p - m), (0, k_p - self.in_features)))

        has_bias = self.bias is not None
        cast_dtype = None
        if self.compute_dtype is not None and self.compute_dtype != x2d.dtype:
            cast_dtype = self.compute_dtype
        use_scratch = jnp.dtype(out_dtype) != jnp.dtype(jnp.float32)

        inputs = [x2d, self.wt]
        in_specs = [
            # TODO(synk): if xprof shows exposed DMA on these streams, try
            # pipeline_mode=pl.Buffered(3) on x/w specs and sweep.
            pl.BlockSpec((tm, tk), lambda i, j, k: (i, k)),   # x tile   [tm, tk]
            pl.BlockSpec((tk, tn), lambda i, j, k: (k, j)),   # W^T tile [tk, tn]
        ]
        if has_bias:
            inputs.append(self.bias)
            in_specs.append(pl.BlockSpec((1, tn), lambda i, j, k: (0, j)))

        scratch_shapes = [pltpu.VMEM((tm, tn), jnp.float32)] if use_scratch else []
        grid = (m_p // tm, n_p // tn, k_p // tk)

        # ---- explicit VMEM budget (double-buffered tiles + scratch) with headroom.
        x_item = jnp.dtype(x2d.dtype).itemsize
        w_item = jnp.dtype(self.wt.dtype).itemsize
        o_item = jnp.dtype(out_dtype).itemsize
        vmem_bytes = (2 * tm * tk * x_item + 2 * tk * tn * w_item
                      + 2 * tm * tn * o_item
                      + (tm * tn * 4 if use_scratch else 0)
                      + (2 * tn * 4 if has_bias else 0))
        vmem_limit = min(max(vmem_bytes + (8 << 20), 32 << 20), 112 << 20)

        cost = pl.CostEstimate(
            flops=2 * m_p * n_p * k_p,
            transcendentals=0,
            bytes_accessed=(m_p * k_p * x_item * (n_p // tn)
                            + k_p * n_p * w_item * (m_p // tm)
                            + m_p * n_p * o_item),
        )

        out2d = pl.pallas_call(
            _make_kernel(has_bias, use_scratch, cast_dtype),
            out_shape=jax.ShapeDtypeStruct((m_p, n_p), out_dtype),
            grid_spec=pltpu.PrefetchScalarGridSpec(
                num_scalar_prefetch=0,
                grid=grid,
                in_specs=in_specs,
                out_specs=pl.BlockSpec((tm, tn), lambda i, j, k: (i, j)),
                scratch_shapes=scratch_shapes,
            ),
            compiler_params=pltpu.CompilerParams(
                dimension_semantics=("parallel", "parallel", "arbitrary"),
                vmem_limit_bytes=vmem_limit,
            ),
            cost_estimate=cost,
        )(*inputs)

        if (m_p, n_p) != (m, self.out_features):
            out2d = out2d[:m, :self.out_features]
        return out2d.reshape(*lead_shape, self.out_features)


if __name__ == "__main__":
    # Small shapes consistent with a Linear wrapped by SplitProjection.
    batch, seq = 2, 8
    in_features, out_features = 512, 256
    serialization_factor = 4  # split_size = 128 (API contract only)

    key = jax.random.PRNGKey(0)
    kx, kw, kb = jax.random.split(key, 3)
    x = jax.random.normal(kx, (batch, seq, in_features), dtype=jnp.float32)
    weight = jax.random.normal(kw, (out_features, in_features), dtype=jnp.float32) * 0.02
    bias = jax.random.normal(kb, (out_features,), dtype=jnp.float32) * 0.02

    ref = x @ weight.T + bias

    # f32 path, with bias (weight prep cached in the module object).
    proj = SplitProjectionTPU(weight, bias, serialization_factor)
    out = jax.block_until_ready(proj(x))
    assert out.shape == (batch, seq, out_features)
    assert jnp.allclose(out, ref, atol=1e-4, rtol=1e-4)

    # Bias-free variant (separate kernel signature path).
    proj_nb = SplitProjectionTPU(weight, None, serialization_factor)
    out_nb = jax.block_until_ready(proj_nb(x))
    assert jnp.allclose(out_nb, x @ weight.T, atol=1e-4, rtol=1e-4)

    # bf16 MXU compute (weight stored bf16, f32 accumulation) — looser tolerance.
    proj_bf16 = SplitProjectionTPU(weight, bias, serialization_factor,
                                   compute_dtype=jnp.bfloat16)
    out_bf = jax.block_until_ready(proj_bf16(x))
    assert jnp.allclose(out_bf, ref, atol=5e-2, rtol=5e-2)

    print("KERNEL_OK")
</pallas_src>

<mosaic_0001>
module attributes {stable_mosaic.version = 11 : i64} {
  func.func @kernel(%arg0: i32, %arg1: i32, %arg2: i32, %arg3: memref<16x512xf32, #tpu.memory_space<vmem>>, %arg4: memref<512x128xf32, #tpu.memory_space<vmem>>, %arg5: memref<1x128xf32, #tpu.memory_space<vmem>>, %arg6: memref<16x128xf32, #tpu.memory_space<vmem>>) attributes {dimension_semantics = [#tpu.dimension_semantics<parallel>, #tpu.dimension_semantics<parallel>, #tpu.dimension_semantics<arbitrary>], iteration_bounds = array<i64: 1, 2, 1>, scalar_prefetch = 0 : i64, scratch_operands = 0 : i64, tpu.core_type = #tpu.core_type<tc>, window_params = [{transform_indices = @transform_0, window_bounds = array<i64: 16, 512>}, {transform_indices = @transform_1, window_bounds = array<i64: 512, 128>}, {transform_indices = @transform_2, window_bounds = array<i64: 1, 128>}, {transform_indices = @transform_3, window_bounds = array<i64: 16, 128>}]} {
    %c0_i32 = arith.constant 0 : i32
    %0 = arith.cmpi eq, %arg2, %c0_i32 : i32
    %1 = arith.extui %0 : i1 to i32
    %c0_i32_0 = arith.constant 0 : i32
    %2 = arith.cmpi ne, %1, %c0_i32_0 : i32
    scf.if %2 {
      %cst_10 = arith.constant 0.000000e+00 : f32
      %12 = vector.broadcast %cst_10 : f32 to vector<16x128xf32>
      %c0_11 = arith.constant 0 : index
      %c0_12 = arith.constant 0 : index
      %13 = vector.load %arg6[%c0_11, %c0_12] : memref<16x128xf32, #tpu.memory_space<vmem>>, vector<16x128xf32>
      tpu.vector_store %arg6[%c0_11, %c0_12], %12 {strides = array<i32>} : memref<16x128xf32, #tpu.memory_space<vmem>>, vector<16x128xf32>,
    } else {
    }
    %c0 = arith.constant 0 : index
    %c0_1 = arith.constant 0 : index
    %3 = vector.load %arg3[%c0, %c0_1] : memref<16x512xf32, #tpu.memory_space<vmem>>, vector<16x512xf32>
    %c0_2 = arith.constant 0 : index
    %c0_3 = arith.constant 0 : index
    %4 = vector.load %arg6[%c0_2, %c0_3] : memref<16x128xf32, #tpu.memory_space<vmem>>, vector<16x128xf32>
    %c0_4 = arith.constant 0 : index
    %c0_5 = arith.constant 0 : index
    %5 = vector.load %arg4[%c0_4, %c0_5] : memref<512x128xf32, #tpu.memory_space<vmem>>, vector<512x128xf32>
    %cst = arith.constant dense<0.000000e+00> : vector<16x128xf32>
    %6 = tpu.matmul %3, %5, %cst {dimension_numbers = #tpu.dot_dimension_numbers<[1], [0], [0], [1], [0, 0, 1, 1], [], []>} : vector<16x512xf32>, vector<512x128xf32>, vector<16x128xf32> -> vector<16x128xf32>
    %7 = arith.addf %4, %6 : vector<16x128xf32>
    %c0_6 = arith.constant 0 : index
    %c0_7 = arith.constant 0 : index
    %8 = vector.load %arg6[%c0_6, %c0_7] : memref<16x128xf32, #tpu.memory_space<vmem>>, vector<16x128xf32>
    tpu.vector_store %arg6[%c0_6, %c0_7], %7 {strides = array<i32>} : memref<16x128xf32, #tpu.memory_space<vmem>>, vector<16x128xf32>,
    %c0_i32_8 = arith.constant 0 : i32
    %9 = arith.cmpi eq, %arg2, %c0_i32_8 : i32
    %10 = arith.extui %9 : i1 to i32
    %c0_i32_9 = arith.constant 0 : i32
    %11 = arith.cmpi ne, %10, %c0_i32_9 : i32
    scf.if %11 {
      %c0_10 = arith.constant 0 : index
      %c0_11 = arith.constant 0 : index
      %12 = vector.load %arg6[%c0_10, %c0_11] : memref<16x128xf32, #tpu.memory_space<vmem>>, vector<16x128xf32>
      %c0_12 = arith.constant 0 : index
      %c0_13 = arith.constant 0 : index
      %13 = vector.load %arg5[%c0_12, %c0_13] : memref<1x128xf32, #tpu.memory_space<vmem>>, vector<1x128xf32>
      %14 = vector.broadcast %13 : vector<1x128xf32> to vector<16x128xf32>
      %15 = arith.addf %12, %14 : vector<16x128xf32>
      %c0_14 = arith.constant 0 : index
      %c0_15 = arith.constant 0 : index
      %16 = vector.load %arg6[%c0_14, %c0_15] : memref<16x128xf32, #tpu.memory_space<vmem>>, vector<16x128xf32>
      tpu.vector_store %arg6[%c0_14, %c0_15], %15 {strides = array<i32>} : memref<16x128xf32, #tpu.memory_space<vmem>>, vector<16x128xf32>,
    } else {
    }
    return
  }
  func.func @transform_0(%arg0: i32, %arg1: i32, %arg2: i32) -> (i32, i32) {
    %c0_i32 = arith.constant 0 : i32
    return %arg0, %arg2 : i32, i32
  }
  func.func @transform_1(%arg0: i32, %arg1: i32, %arg2: i32) -> (i32, i32) {
    %c0_i32 = arith.constant 0 : i32
    return %arg2, %arg1 : i32, i32
  }
  func.func @transform_2(%arg0: i32, %arg1: i32, %arg2: i32) -> (i32, i32) {
    %c0_i32 = arith.constant 0 : i32
    %c0_i32_0 = arith.constant 0 : i32
    return %c0_i32, %arg1 : i32, i32
  }
  func.func @transform_3(%arg0: i32, %arg1: i32, %arg2: i32) -> (i32, i32) {
    %c0_i32 = arith.constant 0 : i32
    return %arg0, %arg1 : i32, i32
  }
}

</mosaic_0001>

<llo_original>
// kernel: tpu_custom_call.1
$region0: #{tpu_custom_call.1}
  #allocation0 [shape = 'u32[]', space=smem, size = 0x4, offset = 0x4, fixed_abs, tag = 'smem constant byte address 0x4 - core index']
  #allocation1 [shape = 'u32[144,128]{1,0:T(1,128)}', space=vmem, size = 0x12000, scoped, tag = 'internal scratch']
  %s0 = inlined_call_operand.hbm [shape: f32[16,512], index: 0, kind: input, shape index: {}]
  %s1 = inlined_call_operand.hbm [shape: f32[512,256], index: 1, kind: input, shape index: {}]
  %s2 = inlined_call_operand.vmem [shape: f32[1,256], index: 2, kind: input, shape index: {}]
  %s3 = inlined_call_operand.hbm [shape: f32[16,256], index: 3, kind: output, shape index: {}]
  %s4 = sld [smem:[#allocation0]]
  $region61: #{tpu_custom_call.1} parent=0
    _
  %s6 = ssub.s32 1, %s4
  %s7 = scalar_select 0, %s6, %s4
  $region1: #{tpu_custom_call.1} parent=0
    #allocation2 [shape = 'u8[32768]{0}', space=vmem, size = 0x8000, scoped, tag = 'input window, operand 0, single buffered']
    #allocation3 [shape = 's32[2]{0}', space=sflag, size = 0x8, scoped, tag = 'scoped memory for tpu_custom_call.1']
    #allocation4 [shape = 's32[2]{0}', space=sflag, size = 0x8, scoped, tag = 'scoped memory for tpu_custom_call.1']
    #allocation5 [shape = 'u8[524288]{0}', space=vmem, size = 0x80000, scoped, tag = 'input window, operand 1']
    #allocation6 [shape = 's32[2]{0}', space=sflag, size = 0x8, scoped, tag = 'scoped memory for tpu_custom_call.1']
    #allocation7 [shape = 'u8[16384]{0}', space=vmem, size = 0x4000, scoped, tag = 'output window, operand 0']
    %8 = vsyncpa [#allocation3], 0
    %9 = vsyncpa [#allocation6], 0
    %s10 = scalar_lea.sflag [#allocation6], 1
    %11 = vsyncpa %s10, 0
    %12 = vsyncpa [#allocation4], 0
    %s13 = scalar_lea.sflag [#allocation4], 1
    %14 = vsyncpa %s13, 0
    loop: start=0, step=1, limit=4
    $region2: #{tpu_custom_call.1} parent=1 // loop_pre_header
      _
    $region3: #{tpu_custom_call.1} parent=1 // loop_header
      %s16 = sphi 0, %s20
      %p17 = scmp.ge.s32.totalorder %s16, 4
      %s23 = sphi 0, %s42
      %s24 = sphi 0, %s38
      %s25 = sphi 0, %s34
      %s26 = sphi 0, %s23
      %s27 = sphi 0, %s24
      %s28 = sphi 0, %s25
      %s29 = sphi 0, %s26
      %s30 = sphi 0, %s27
      %s31 = sphi 0, %s28
      %s47 = sphi 0, %s49
      %s50 = sphi 0, %s47
      %s51 = sphi 0, %s50
      %s67 = sphi 0, %s51
      %s75 = sphi 0, %s77
      %s78 = sphi 0, %s75
      %s79 = sphi 0, %s78
      %s95 = sphi 0, %s79
      %s101 = sphi 0, %s103
      %s104 = sphi 0, %s101
      %s105 = sphi 0, %s104
      %s121 = sphi 0, %s105
      %s129 = sphi 0, %s131
      %s132 = sphi 0, %s129
      %s133 = sphi 0, %s132
      %s149 = sphi 0, %s133
    $region4: #{tpu_custom_call.1} parent=1 // loop_header_branch
      %19 = sbr.rel (%p17) target = $region8
    $region5: #{tpu_custom_call.1} parent=1 // loop_body
      %s21 = ssub.s32 %s16, 1
      %s22 = ssub.s32 %s16, 2
      %s32 = sadd.s32 1, %s25
      %p33 = scmp.ge.s32.totalorder %s32, 1
      %s34 = scalar_select %p33, 0, %s32
      %s35 = sadd.s32 1, %s24
      %s36 = scalar_select %p33, %s35, %s24
      %p37 = scmp.ge.s32.totalorder %s36, 2
      %s38 = scalar_select %p37, 0, %s36
      %s39 = sadd.s32 1, %s23
      %s40 = scalar_select %p37, %s39, %s23
      %p41 = scmp.ge.s32.totalorder %s40, 1
      %s42 = scalar_select %p41, 0, %s40
      %s43 = ssub.s32 %s23, %s42
      %s44 = ssub.s32 %s25, %s34
      %s45 = sor.u32 %s43, %s44
      %p46 = scmp.eq.s32.totalorder %s45, 0
      %s48 = sadd.s32 %s47, 1
      %s49 = scalar_select %p46, %s47, %s48
      %p52 = pneg %p46
      %p53 = scmp.eq.s32.totalorder %s16, 1
      %p54 = por %p52, %p53
      %p55 = scmp.ne.s32.totalorder %s47, %s50
      %p56 = scmp.eq.s32.totalorder %s16, 0
      %p57 = por %p55, %p56
      %p58 = scmp.ne.s32.totalorder %s47, %s50
      %p59 = scmp.eq.s32.totalorder %s21, 1
      %p60 = por %p58, %p59
      %p61 = scmp.ne.s32.totalorder %s50, %s51
      %p62 = scmp.eq.s32.totalorder %s21, 0
      %p63 = por %p61, %p62
      %p64 = scmp.ne.s32.totalorder %s50, %s51
      %p65 = scmp.eq.s32.totalorder %s22, 1
      %p66 = por %p64, %p65
      %p68 = scmp.ne.s32.totalorder %s51, %s67
      %p69 = scmp.eq.s32.totalorder %s22, 0
      %p70 = por %p68, %p69
      %s71 = ssub.s32 %s25, %s34
      %s72 = ssub.s32 %s24, %s38
      %s73 = sor.u32 %s71, %s72
      %p74 = scmp.eq.s32.totalorder %s73, 0
      %s76 = sadd.s32 %s75, 1
      %s77 = scalar_select %p74, %s75, %s76
      %p80 = pneg %p74
      %p81 = scmp.eq.s32.totalorder %s16, 1
      %p82 = por %p80, %p81
      %p83 = scmp.ne.s32.totalorder %s75, %s78
      %p84 = scmp.eq.s32.totalorder %s16, 0
      %p85 = por %p83, %p84
      %p86 = scmp.ne.s32.totalorder %s75, %s78
      %p87 = scmp.eq.s32.totalorder %s21, 1
      %p88 = por %p86, %p87
      %p89 = scmp.ne.s32.totalorder %s78, %s79
      %p90 = scmp.eq.s32.totalorder %s21, 0
      %p91 = por %p89, %p90
      %p92 = scmp.ne.s32.totalorder %s78, %s79
      %p93 = scmp.eq.s32.totalorder %s22, 1
      %p94 = por %p92, %p93
      %p96 = scmp.ne.s32.totalorder %s79, %s95
      %p97 = scmp.eq.s32.totalorder %s22, 0
      %p98 = por %p96, %p97
      %s99 = ssub.s32 %s24, %s38
      %p100 = scmp.eq.s32.totalorder %s99, 0
      %s102 = sadd.s32 %s101, 1
      %s103 = scalar_select %p100, %s101, %s102
      %p106 = pneg %p100
      %p107 = scmp.eq.s32.totalorder %s16, 1
      %p108 = por %p106, %p107
      %p109 = scmp.ne.s32.totalorder %s101, %s104
      %p110 = scmp.eq.s32.totalorder %s16, 0
      %p111 = por %p109, %p110
      %p112 = scmp.ne.s32.totalorder %s101, %s104
      %p113 = scmp.eq.s32.totalorder %s21, 1
      %p114 = por %p112, %p113
      %p115 = scmp.ne.s32.totalorder %s104, %s105
      %p116 = scmp.eq.s32.totalorder %s21, 0
      %p117 = por %p115, %p116
      %p118 = scmp.ne.s32.totalorder %s104, %s105
      %p119 = scmp.eq.s32.totalorder %s22, 1
      %p120 = por %p118, %p119
      %p122 = scmp.ne.s32.totalorder %s105, %s121
      %p123 = scmp.eq.s32.totalorder %s22, 0
      %p124 = por %p122, %p123
      %s125 = ssub.s32 %s23, %s42
      %s126 = ssub.s32 %s24, %s38
      %s127 = sor.u32 %s125, %s126
      %p128 = scmp.eq.s32.totalorder %s127, 0
      %s130 = sadd.s32 %s129, 1
      %s131 = scalar_select %p128, %s129, %s130
      %p134 = pneg %p128
      %p135 = scmp.eq.s32.totalorder %s16, 1
      %p136 = por %p134, %p135
      %p137 = scmp.ne.s32.totalorder %s129, %s132
      %p138 = scmp.eq.s32.totalorder %s16, 0
      %p139 = por %p137, %p138
      %p140 = scmp.ne.s32.totalorder %s129, %s132
      %p141 = scmp.eq.s32.totalorder %s21, 1
      %p142 = por %p140, %p141
      %p143 = scmp.ne.s32.totalorder %s132, %s133
      %p144 = scmp.eq.s32.totalorder %s21, 0
      %p145 = por %p143, %p144
      %p146 = scmp.ne.s32.totalorder %s132, %s133
      %p147 = scmp.eq.s32.totalorder %s22, 1
      %p148 = por %p146, %p147
      %p150 = scmp.ne.s32.totalorder %s133, %s149
      %p151 = scmp.eq.s32.totalorder %s22, 0
      %p152 = por %p150, %p151
      %p153 = scmp.le.s32.totalorder 1, %s16
      %p154 = scmp.lt.s32.totalorder %s16, 3
      %p155 = pnand %p153, %p154
      %p156 = pneg %p155
      // Predicated region
      $region9: #{tpu_custom_call.1} parent=5 // pred_check
        _
      $region10: #{tpu_custom_call.1} parent=5 // pred_check_branch
        %158 = sbr.rel (%p155) target = $region12
      $region11: #{tpu_custom_call.1} parent=5 // pred_region
        %s159 = ssub.s32 %s16, 1
        // Predicated region
        $region13: #{tpu_custom_call.1} parent=11 // pred_check
          %p160 = pneg %p63
        $region14: #{tpu_custom_call.1} parent=11 // pred_check_branch
          %162 = sbr.rel (%p160) target = $region16
        $region15: #{tpu_custom_call.1} parent=11 // pred_region
          %s163 = smul.u32 2, %s26
          %s164 = smul.u32 4, %s28
          %s166 = ssub.s32 1024, 1024
          %167 = vsyncadd [#allocation3], %s166
          %s168 = smul.addr %s163, 4
          %s169 = sadd.s32 %s164, %s168
          %s170 = smul.addr %s169, 128
          %s171 = scalar_lea.hbm %s0, %s170
          %s172 = sshll.u32 [#allocation2], 4
          %s173 = int_to_ptr.vmem [resolvable:$true] %s172
          %178 = dma.hbm_to_vmem [thread:$0]  %s171, 1024, %s173, [#allocation3], 512, 512, 32
        $region16: #{tpu_custom_call.1} parent=11 // pred_fallthru
          _
      $region12: #{tpu_custom_call.1} parent=5 // pred_fallthru
        _
      %p179 = scmp.lt.s32.totalorder %s16, 2
      // Predicated region
      $region17: #{tpu_custom_call.1} parent=5 // pred_check
        %p180 = pneg %p179
      $region18: #{tpu_custom_call.1} parent=5 // pred_check_branch
        %182 = sbr.rel (%p180) target = $region20
      $region19: #{tpu_custom_call.1} parent=5 // pred_region
        // Predicated region
        $region21: #{tpu_custom_call.1} parent=19 // pred_check
          %p183 = pneg %p85
        $region22: #{tpu_custom_call.1} parent=19 // pred_check_branch
          %185 = sbr.rel (%p183) target = $region24
        $region23: #{tpu_custom_call.1} parent=19 // pred_region
          %s186 = sand.u32 %s75, 1
          %s187 = scalar_lea.sflag [#allocation6], %s186
          %s188 = sand.u32 %s75, 1
          %s189 = smul.addr %s188, 512
          %s190 = scalar_lea.vmem [#allocation5], %s189
          %s191 = smul.u32 64, %s25
          %s193 = ssub.s32 8192, 8192
          %194 = vsyncadd %s187, %s193
          %s195 = smul.addr %s191, 2
          %s196 = sadd.s32 %s24, %s195
          %s197 = smul.addr %s196, 128
          %s198 = scalar_lea.hbm %s1, %s197
          %s199 = sshll.u32 %s190, 4
          %s200 = int_to_ptr.vmem [resolvable:$true] %s199
          %205 = dma.hbm_to_vmem [thread:$0]  %s198, 8192, %s200, %s187, 256, 128, 8
        $region24: #{tpu_custom_call.1} parent=19 // pred_fallthru
          _
        // Predicated region
        $region25: #{tpu_custom_call.1} parent=19 // pred_check
          %p206 = pneg %p111
        $region26: #{tpu_custom_call.1} parent=19 // pred_check_branch
          %208 = sbr.rel (%p206) target = $region28
        $region27: #{tpu_custom_call.1} parent=19 // pred_region
          %p209 = scmp.lt.s32.totalorder %s24, 1
          %s210 = scalar_select %p209, %s24, 1
          %s211 = scalar_lea.vmem %s2, %s210
        $region28: #{tpu_custom_call.1} parent=19 // pred_fallthru
          _
      $region20: #{tpu_custom_call.1} parent=5 // pred_fallthru
        _
      %p212 = scmp.le.s32.totalorder 1, %s16
      %p213 = scmp.lt.s32.totalorder %s16, 3
      %p214 = pnand %p212, %p213
      %p215 = pneg %p214
      // Predicated region
      $region29: #{tpu_custom_call.1} parent=5 // pred_check
        _
      $region30: #{tpu_custom_call.1} parent=5 // pred_check_branch
        %217 = sbr.rel (%p214) target = $region32
      $region31: #{tpu_custom_call.1} parent=5 // pred_region
        %s218 = ssub.s32 %s16, 1
        // Predicated region
        $region33: #{tpu_custom_call.1} parent=31 // pred_check
          %p219 = pneg %p63
        $region34: #{tpu_custom_call.1} parent=31 // pred_check_branch
          %221 = sbr.rel (%p219) target = $region36
        $region35: #{tpu_custom_call.1} parent=31 // pred_region
          %222 = dma.done [#allocation3], 1024
        $region36: #{tpu_custom_call.1} parent=31 // pred_fallthru
          _
        %s223 = sand.u32 %s78, 1
        %s224 = scalar_lea.sflag [#allocation6], %s223
        %s225 = sand.u32 %s78, 1
        %s226 = smul.addr %s225, 512
        %s227 = scalar_lea.vmem [#allocation5], %s226
        // Predicated region
        $region37: #{tpu_custom_call.1} parent=31 // pred_check
          %p228 = pneg %p91
        $region38: #{tpu_custom_call.1} parent=31 // pred_check_branch
          %230 = sbr.rel (%p228) target = $region40
        $region39: #{tpu_custom_call.1} parent=31 // pred_region
          %231 = dma.done %s224, 8192
        $region40: #{tpu_custom_call.1} parent=31 // pred_fallthru
          _
        %p232 = pneg %p63
        %p233 = pneg %p60
        %s234 = sand.u32 %s78, 1
        %s235 = scalar_lea.sflag [#allocation6], %s234
        %s236 = sand.u32 %s78, 1
        %s237 = smul.addr %s236, 512
        %s238 = scalar_lea.vmem [#allocation5], %s237
        %p239 = pneg %p91
        %p240 = pneg %p88
        %p241 = scmp.lt.s32.totalorder %s27, 1
        %s242 = scalar_select %p241, %s27, 1
        %s243 = scalar_lea.vmem %s2, %s242
        %p244 = pneg %p117
        %p245 = pneg %p114
        %p246 = pneg %p145
        %p247 = pneg %p142
        %s248 = sand.u32 %s132, 1
        %s249 = scalar_lea.sflag [#allocation4], %s248
        %s250 = sand.u32 %s132, 1
        %s251 = smul.addr %s250, 16
        %s252 = scalar_lea.vmem [#allocation7], %s251
        %s253 = smul.u32 2, %s26
        %s254 = smul.u32 4, %s28
        %s255 = smul.u32 64, %s28
        %p256 = scmp.lt.s32.totalorder %s27, 1
        %s257 = scalar_select %p256, %s27, 1
        %s258 = scalar_lea.vmem %s2, %s257
        %s259 = smul.u32 2, %s26
        %p260 = scmp.eq.s32.totalorder %s28, 0
        // Predicated region
        $region41: #{tpu_custom_call.1} parent=31 // pred_check
          %p261 = pneg %p260
        $region42: #{tpu_custom_call.1} parent=31 // pred_check_branch
          %263 = sbr.rel (%p261) target = $region44
        $region43: #{tpu_custom_call.1} parent=31 // pred_region
          %264 = vst [vmem:[%s252] sm:$0xff] 0.0
          %265 = vst [vmem:[%s252 + $0x8] sm:$0xff] 0.0
        $region44: #{tpu_custom_call.1} parent=31 // pred_fallthru
          _
        %v266 = vld [vmem:[#allocation2] sm:$0xff]
        %v267 = vld [vmem:[#allocation2 + $0x8] sm:$0xff]
        %v268 = vld [vmem:[#allocation2 + $0x10] sm:$0xff]
        %v269 = vld [vmem:[#allocation2 + $0x18] sm:$0xff]
        %v270 = vld [vmem:[#allocation2 + $0x20] sm:$0xff]
        %v271 = vld [vmem:[#allocation2 + $0x28] sm:$0xff]
        %v272 = vld [vmem:[#allocation2 + $0x30] sm:$0xff]
        %v273 = vld [vmem:[#allocation2 + $0x38] sm:$0xff]
        %v274 = vld [vmem:[%s252] sm:$0xff]
        %v275 = vld [vmem:[%s252 + $0x8] sm:$0xff]
        %v276 = vld [vmem:[%s227] sm:$0xff]
        %v277 = vld [vmem:[%s227 + $0x8] sm:$0xff]
        %v278 = vld [vmem:[%s227 + $0x10] sm:$0xff]
        %v279 = vld [vmem:[%s227 + $0x18] sm:$0xff]
        %v280 = vld [vmem:[%s227 + $0x20] sm:$0xff]
        %v281 = vld [vmem:[%s227 + $0x28] sm:$0xff]
        %v282 = vld [vmem:[%s227 + $0x30] sm:$0xff]
        %v283 = vld [vmem:[%s227 + $0x38] sm:$0xff]
        %v284 = vld [vmem:[%s227 + $0x40] sm:$0xff]
        %v285 = vld [vmem:[%s227 + $0x48] sm:$0xff]
        %v286 = vld [vmem:[%s227 + $0x50] sm:$0xff]
        %v287 = vld [vmem:[%s227 + $0x58] sm:$0xff]
        %v288 = vld [vmem:[%s227 + $0x60] sm:$0xff]
        %v289 = vld [vmem:[%s227 + $0x68] sm:$0xff]
        %v290 = vld [vmem:[%s227 + $0x70] sm:$0xff]
        %v291 = vld [vmem:[%s227 + $0x78] sm:$0xff]
        %v292 = vld [vmem:[%s227 + $0x80] sm:$0xff]
        %v293 = vld [vmem:[%s227 + $0x88] sm:$0xff]
        %v294 = vld [vmem:[%s227 + $0x90] sm:$0xff]
        %v295 = vld [vmem:[%s227 + $0x98] sm:$0xff]
        %v296 = vld [vmem:[%s227 + $0xa0] sm:$0xff]
        %v297 = vld [vmem:[%s227 + $0xa8] sm:$0xff]
        %v298 = vld [vmem:[%s227 + $0xb0] sm:$0xff]
        %v299 = vld [vmem:[%s227 + $0xb8] sm:$0xff]
        %v300 = vld [vmem:[%s227 + $0xc0] sm:$0xff]
        %v301 = vld [vmem:[%s227 + $0xc8] sm:$0xff]
        %v302 = vld [vmem:[%s227 + $0xd0] sm:$0xff]
        %v303 = vld [vmem:[%s227 + $0xd8] sm:$0xff]
        %v304 = vld [vmem:[%s227 + $0xe0] sm:$0xff]
        %v305 = vld [vmem:[%s227 + $0xe8] sm:$0xff]
        %v306 = vld [vmem:[%s227 + $0xf0] sm:$0xff]
        %v307 = vld [vmem:[%s227 + $0xf8] sm:$0xff]
        %v308 = vld [vmem:[%s227 + $0x100] sm:$0xff]
        %v309 = vld [vmem:[%s227 + $0x108] sm:$0xff]
        %v310 = vld [vmem:[%s227 + $0x110] sm:$0xff]
        %v311 = vld [vmem:[%s227 + $0x118] sm:$0xff]
        %v312 = vld [vmem:[%s227 + $0x120] sm:$0xff]
        %v313 = vld [vmem:[%s227 + $0x128] sm:$0xff]
        %v314 = vld [vmem:[%s227 + $0x130] sm:$0xff]
        %v315 = vld [vmem:[%s227 + $0x138] sm:$0xff]
        %v316 = vld [vmem:[%s227 + $0x140] sm:$0xff]
        %v317 = vld [vmem:[%s227 + $0x148] sm:$0xff]
        %v318 = vld [vmem:[%s227 + $0x150] sm:$0xff]
        %v319 = vld [vmem:[%s227 + $0x158] sm:$0xff]
        %v320 = vld [vmem:[%s227 + $0x160] sm:$0xff]
        %v321 = vld [vmem:[%s227 + $0x168] sm:$0xff]
        %v322 = vld [vmem:[%s227 + $0x170] sm:$0xff]
        %v323 = vld [vmem:[%s227 + $0x178] sm:$0xff]
        %v324 = vld [vmem:[%s227 + $0x180] sm:$0xff]
        %v325 = vld [vmem:[%s227 + $0x188] sm:$0xff]
        %v326 = vld [vmem:[%s227 + $0x190] sm:$0xff]
        %v327 = vld [vmem:[%s227 + $0x198] sm:$0xff]
        %v328 = vld [vmem:[%s227 + $0x1a0] sm:$0xff]
        %v329 = vld [vmem:[%s227 + $0x1a8] sm:$0xff]
        %v330 = vld [vmem:[%s227 + $0x1b0] sm:$0xff]
        %v331 = vld [vmem:[%s227 + $0x1b8] sm:$0xff]
        %v332 = vld [vmem:[%s227 + $0x1c0] sm:$0xff]
        %v333 = vld [vmem:[%s227 + $0x1c8] sm:$0xff]
        %v334 = vld [vmem:[%s227 + $0x1d0] sm:$0xff]
        %v335 = vld [vmem:[%s227 + $0x1d8] sm:$0xff]
        %v336 = vld [vmem:[%s227 + $0x1e0] sm:$0xff]
        %v337 = vld [vmem:[%s227 + $0x1e8] sm:$0xff]
        %v338 = vld [vmem:[%s227 + $0x1f0] sm:$0xff]
        %v339 = vld [vmem:[%s227 + $0x1f8] sm:$0xff]
        %340 = vmatprep.subr.mxu0 0.0
        %341 = vmatpush1.msra.mxu0 %v276
        %342 = vmatprep.subr.mxu0 0.0
        %343 = vmatpush1.msra.mxu0 %v277
        %344 = vmatprep.subr.mxu0 0.0
        %345 = vmatpush1.msra.mxu0 %v278
        %346 = vmatprep.subr.mxu0 0.0
        %347 = vmatpush1.msra.mxu0 %v279
        %348 = vmatprep.subr.mxu0 0.0
        %349 = vmatpush1.msra.mxu0 %v280
        %350 = vmatprep.subr.mxu0 0.0
        %351 = vmatpush1.msra.mxu0 %v281
        %352 = vmatprep.subr.mxu0 0.0
        %353 = vmatpush1.msra.mxu0 %v282
        %354 = vmatprep.subr.mxu0 0.0
        %355 = vmatpush1.msra.mxu0 %v283
        %356 = vmatprep.subr.mxu0 0.0
        %357 = vmatpush1.msra.mxu0 %v284
        %358 = vmatprep.subr.mxu0 0.0
        %359 = vmatpush1.msra.mxu0 %v285
        %360 = vmatprep.subr.mxu0 0.0
        %361 = vmatpush1.msra.mxu0 %v286
        %362 = vmatprep.subr.mxu0 0.0
        %363 = vmatpush1.msra.mxu0 %v287
        %364 = vmatprep.subr.mxu0 0.0
        %365 = vmatpush1.msra.mxu0 %v288
        %366 = vmatprep.subr.mxu0 0.0
        %367 = vmatpush1.msra.mxu0 %v289
        %368 = vmatprep.subr.mxu0 0.0
        %369 = vmatpush1.msra.mxu0 %v290
        %370 = vmatprep.subr.mxu0 0.0
        %371 = vmatpush1.msra.mxu0 %v291
        %372 = vmatprep.subr.mxu0 0.0
        %373 = vmatpush1.msra.mxu0 %v292
        %374 = vmatprep.subr.mxu0 0.0
        %375 = vmatpush1.msra.mxu0 %v293
        %376 = vmatprep.subr.mxu0 0.0
        %377 = vmatpush1.msra.mxu0 %v294
        %378 = vmatprep.subr.mxu0 0.0
        %379 = vmatpush1.msra.mxu0 %v295
        %380 = vmatprep.subr.mxu0 0.0
        %381 = vmatpush1.msra.mxu0 %v296
        %382 = vmatprep.subr.mxu0 0.0
        %383 = vmatpush1.msra.mxu0 %v297
        %384 = vmatprep.subr.mxu0 0.0
        %385 = vmatpush1.msra.mxu0 %v298
        %386 = vmatprep.subr.mxu0 0.0
        %387 = vmatpush1.msra.mxu0 %v299
        %388 = vmatprep.subr.mxu0 0.0
        %389 = vmatpush1.msra.mxu0 %v300
        %390 = vmatprep.subr.mxu0 0.0
        %391 = vmatpush1.msra.mxu0 %v301
        %392 = vmatprep.subr.mxu0 0.0
        %393 = vmatpush1.msra.mxu0 %v302
        %394 = vmatprep.subr.mxu0 0.0
        %395 = vmatpush1.msra.mxu0 %v303
        %396 = vmatprep.subr.mxu0 0.0
        %397 = vmatpush1.msra.mxu0 %v304
        %398 = vmatprep.subr.mxu0 0.0
        %399 = vmatpush1.msra.mxu0 %v305
        %400 = vmatprep.subr.mxu0 0.0
        %401 = vmatpush1.msra.mxu0 %v306
        %402 = vmatprep.subr.mxu0 0.0
        %403 = vmatpush1.msra.mxu0 %v307
        %404 = vmatprep.mubr.f32.mxu0 %v267
        %405 = vmatmul.mubr.f32.gmra.mrb[0].mxu0 %v266
        %v406 = vpop.f32.mrb[0].mxu0
        %v407 = vadd.f32 0.0, %v406
        %v408 = vpop.f32.mrb[0].mxu0
        %409 = vmatprep.mubr.f32.mxu0 %v271
        %410 = vmatmul.mubr.f32.gmra.mrb[0].mxu0 %v270
        %v411 = vpop.f32.mrb[0].mxu0
        %v412 = vadd.f32 0.0, %v411
        %v413 = vpop.f32.mrb[0].mxu0
        %414 = vdwg.mxu0
        %415 = vmatprep.subr.mxu0 0.0
        %416 = vmatpush1.msra.mxu0 %v308
        %417 = vmatprep.subr.mxu0 0.0
        %418 = vmatpush1.msra.mxu0 %v309
        %419 = vmatprep.subr.mxu0 0.0
        %420 = vmatpush1.msra.mxu0 %v310
        %421 = vmatprep.subr.mxu0 0.0
        %422 = vmatpush1.msra.mxu0 %v311
        %423 = vmatprep.subr.mxu0 0.0
        %424 = vmatpush1.msra.mxu0 %v312
        %425 = vmatprep.subr.mxu0 0.0
        %426 = vmatpush1.msra.mxu0 %v313
        %427 = vmatprep.subr.mxu0 0.0
        %428 = vmatpush1.msra.mxu0 %v314
        %429 = vmatprep.subr.mxu0 0.0
        %430 = vmatpush1.msra.mxu0 %v315
        %431 = vmatprep.subr.mxu0 0.0
        %432 = vmatpush1.msra.mxu0 %v316
        %433 = vmatprep.subr.mxu0 0.0
        %434 = vmatpush1.msra.mxu0 %v317
        %435 = vmatprep.subr.mxu0 0.0
        %436 = vmatpush1.msra.mxu0 %v318
        %437 = vmatprep.subr.mxu0 0.0
        %438 = vmatpush1.msra.mxu0 %v319
        %439 = vmatprep.subr.mxu0 0.0
        %440 = vmatpush1.msra.mxu0 %v320
        %441 = vmatprep.subr.mxu0 0.0
        %442 = vmatpush1.msra.mxu0 %v321
        %443 = vmatprep.subr.mxu0 0.0
        %444 = vmatpush1.msra.mxu0 %v322
        %445 = vmatprep.subr.mxu0 0.0
        %446 = vmatpush1.msra.mxu0 %v323
        %447 = vmatprep.subr.mxu0 0.0
        %448 = vmatpush1.msra.mxu0 %v324
        %449 = vmatprep.subr.mxu0 0.0
        %450 = vmatpush1.msra.mxu0 %v325
        %451 = vmatprep.subr.mxu0 0.0
        %452 = vmatpush1.msra.mxu0 %v326
        %453 = vmatprep.subr.mxu0 0.0
        %454 = vmatpush1.msra.mxu0 %v327
        %455 = vmatprep.subr.mxu0 0.0
        %456 = vmatpush1.msra.mxu0 %v328
        %457 = vmatprep.subr.mxu0 0.0
        %458 = vmatpush1.msra.mxu0 %v329
        %459 = vmatprep.subr.mxu0 0.0
        %460 = vmatpush1.msra.mxu0 %v330
        %461 = vmatprep.subr.mxu0 0.0
        %462 = vmatpush1.msra.mxu0 %v331
        %463 = vmatprep.subr.mxu0 0.0
        %464 = vmatpush1.msra.mxu0 %v332
        %465 = vmatprep.subr.mxu0 0.0
        %466 = vmatpush1.msra.mxu0 %v333
        %467 = vmatprep.subr.mxu0 0.0
        %468 = vmatpush1.msra.mxu0 %v334
        %469 = vmatprep.subr.mxu0 0.0
        %470 = vmatpush1.msra.mxu0 %v335
        %471 = vmatprep.subr.mxu0 0.0
        %472 = vmatpush1.msra.mxu0 %v336
        %473 = vmatprep.subr.mxu0 0.0
        %474 = vmatpush1.msra.mxu0 %v337
        %475 = vmatprep.subr.mxu0 0.0
        %476 = vmatpush1.msra.mxu0 %v338
        %477 = vmatprep.subr.mxu0 0.0
        %478 = vmatpush1.msra.mxu0 %v339
        %479 = vmatprep.mubr.f32.mxu0 %v269
        %480 = vmatmul.mubr.f32.gmra.mrb[0].mxu0 %v268
        %v481 = vpop.f32.mrb[0].mxu0
        %v482 = vadd.f32 %v407, %v481
        %v483 = vpop.f32.mrb[0].mxu0
        %484 = vmatprep.mubr.f32.mxu0 %v273
        %485 = vmatmul.mubr.f32.gmra.mrb[0].mxu0 %v272
        %v486 = vpop.f32.mrb[0].mxu0
        %v487 = vadd.f32 %v412, %v486
        %v488 = vpop.f32.mrb[0].mxu0
        %489 = vdwg.mxu0
        %v490 = vadd.f32 %v274, %v482
        %v491 = vadd.f32 %v275, %v487
        %492 = vst [vmem:[%s252] sm:$0xff] %v490
        %493 = vst [vmem:[%s252 + $0x8] sm:$0xff] %v491
        // Predicated region
        $region45: #{tpu_custom_call.1} parent=31 // pred_check
          %p494 = pneg %p260
        $region46: #{tpu_custom_call.1} parent=31 // pred_check_branch
          %496 = sbr.rel (%p494) target = $region48
        $region47: #{tpu_custom_call.1} parent=31 // pred_region
          %v497 = vld [vmem:[%s252] sm:$0xff]
          %v498 = vld [vmem:[%s252 + $0x8] sm:$0xff]
          %v499 = vld [vmem:[%s258] sm:$0x1]
          %v501 = vlaneseq
          %v502 = vshrl.u32 %v501, 7
          %v503 = vsub.s32 0, %v502
          %v504 = vrot.slane %v499, %v503
          %v506 = vadd.f32 %v497, %v504
          %v507 = vadd.f32 %v498, %v504
          %508 = vst [vmem:[%s252] sm:$0xff] %v506
          %509 = vst [vmem:[%s252 + $0x8] sm:$0xff] %v507
        $region48: #{tpu_custom_call.1} parent=31 // pred_fallthru
          _
        %s510 = sand.u32 %s132, 1
        %s511 = scalar_lea.sflag [#allocation4], %s510
        %s512 = sand.u32 %s132, 1
        %s513 = smul.addr %s512, 16
        %s514 = scalar_lea.vmem [#allocation7], %s513
        // Predicated region
        $region49: #{tpu_custom_call.1} parent=31 // pred_check
          %p515 = pneg %p142
        $region50: #{tpu_custom_call.1} parent=31 // pred_check_branch
          %517 = sbr.rel (%p515) target = $region52
        $region51: #{tpu_custom_call.1} parent=31 // pred_region
          %s518 = smul.u32 2, %s26
          %s520 = ssub.s32 256, 256
          %521 = vsyncadd %s511, %s520
          %s522 = smul.addr %s518, 2
          %s523 = sadd.s32 %s27, %s522
          %s524 = smul.addr %s523, 128
          %s525 = scalar_lea.hbm %s3, %s524
          %s526 = sshll.u32 %s514, 4
          %s527 = int_to_ptr.vmem [resolvable:$true] %s526
          %532 = dma.vmem_to_hbm [thread:$0]  %s527, 256, %s525, %s511, 128, 256, 8
        $region52: #{tpu_custom_call.1} parent=31 // pred_fallthru
          _
      $region32: #{tpu_custom_call.1} parent=5 // pred_fallthru
        _
      %p533 = scmp.le.s32.totalorder 2, %s16
      // Predicated region
      $region53: #{tpu_custom_call.1} parent=5 // pred_check
        %p534 = pneg %p533
      $region54: #{tpu_custom_call.1} parent=5 // pred_check_branch
        %536 = sbr.rel (%p534) target = $region56
      $region55: #{tpu_custom_call.1} parent=5 // pred_region
        %s537 = ssub.s32 %s16, 2
        // Predicated region
        $region57: #{tpu_custom_call.1} parent=55 // pred_check
          %p538 = pneg %p148
        $region58: #{tpu_custom_call.1} parent=55 // pred_check_branch
          %540 = sbr.rel (%p538) target = $region60
        $region59: #{tpu_custom_call.1} parent=55 // pred_region
          %s541 = sand.u32 %s133, 1
          %s542 = scalar_lea.sflag [#allocation4], %s541
          %s543 = sand.u32 %s133, 1
          %s544 = smul.addr %s543, 16
          %s545 = scalar_lea.vmem [#allocation7], %s544
          %546 = dma.done %s542, 256
        $region60: #{tpu_custom_call.1} parent=55 // pred_fallthru
          _
      $region56: #{tpu_custom_call.1} parent=5 // pred_fallthru
        _
    $region6: #{tpu_custom_call.1} parent=1 // loop_footer
      %s20 = sadd.s32 1, %s16
    $region7: #{tpu_custom_call.1} parent=1 // loop_footer_branch
      %15 = sbr.rel target = $region3
    $region8: #{tpu_custom_call.1} parent=1 // loop_exit
      _
    %547 = vsyncpa [#allocation3], 1
    %s548 = scalar_lea.sflag [#allocation3], 1
    %549 = vsyncpa %s548, 1
    %550 = vsyncpa [#allocation6], 1
    %s551 = scalar_lea.sflag [#allocation6], 1
    %552 = vsyncpa %s551, 1
    %553 = vsyncpa [#allocation4], 1
    %s554 = scalar_lea.sflag [#allocation4], 1
    %555 = vsyncpa %s554, 1

</llo_original>
